<compile_context>
chip_gen: v6e
topology: v6e:2x2x1
jax: 0.10.0
libtpu: 0.0.40
codegen_flags: <defaults>
</compile_context>

<pallas_src>
import functools

import jax
import jax.numpy as jnp
from jax.experimental import pallas as pl
from jax.experimental.pallas import tpu as pltpu


def _round_up(v, m):
    return (v + m - 1) // m * m


def _choose_tile(n):
    # Row/reduction tile for the adjacency matmuls. Lane dim must be a
    # multiple of 128 (or the full dim); 512 is a good HBM-roofline tile that
    # comfortably fits every generation's VMEM (v5e/v6e/v7x).
    if n <= 512:
        return _round_up(max(n, 8), 128)
    return 512


# ----------------------------------------------------------------------------
# Kernel 1: per-layer feature projections  xw = x @ Wc,  yw = y @ Wl  (bf16 out)
# ----------------------------------------------------------------------------
def proj_kernel(x_ref, y_ref, wc_ref, wl_ref, xw_ref, yw_ref):
    xw_ref[...] = jnp.dot(x_ref[...], wc_ref[...],
                          preferred_element_type=jnp.float32).astype(jnp.bfloat16)
    yw_ref[...] = jnp.dot(y_ref[...], wl_ref[...],
                          preferred_element_type=jnp.float32).astype(jnp.bfloat16)


def project_features(x_pad, y_pad, wc_t, wl_t, tile):
    n_pad, cin = x_pad.shape
    ccls = y_pad.shape[1]
    hid = wc_t.shape[1]
    xw, yw = pl.pallas_call(
        proj_kernel,
        out_shape=(jax.ShapeDtypeStruct((n_pad, hid), jnp.bfloat16),
                   jax.ShapeDtypeStruct((n_pad, hid), jnp.bfloat16)),
        grid_spec=pltpu.PrefetchScalarGridSpec(
            num_scalar_prefetch=0,
            grid=(n_pad // tile,),
            in_specs=[
                pl.BlockSpec((tile, cin), lambda i: (i, 0)),
                pl.BlockSpec((tile, ccls), lambda i: (i, 0)),
                pl.BlockSpec((cin, hid), lambda i: (0, 0)),
                pl.BlockSpec((ccls, hid), lambda i: (0, 0)),
            ],
            out_specs=(pl.BlockSpec((tile, hid), lambda i: (i, 0)),
                       pl.BlockSpec((tile, hid), lambda i: (i, 0))),
        ),
        compiler_params=pltpu.CompilerParams(
            dimension_semantics=("parallel",),
            vmem_limit_bytes=48 * 1024 * 1024),
    )(x_pad, y_pad, wc_t, wl_t)
    return xw, yw


# ----------------------------------------------------------------------------
# Kernel 2: one full LFLF_GCN layer, tiled over (row tiles, reduction tiles)
# ----------------------------------------------------------------------------
def lflf_layer_kernel(a_ref, aw_ref, xw_ref, yw_ref,
                      bc_ref, bl_ref,                 # conv / label_conv biases (1,H)
                      w1_ref, b1_ref, w2_ref,         # attention: (H,Ah),(1,Ah),(1,Ah)
                      wwide_ref, bwide_ref,           # packed mlp: (H,PACK),(1,PACK)
                      out_ref,                        # (TM, PACK) packed [x | y | 0]
                      acc_adj, acc_lab,               # f32 VMEM accumulators (TM,H)
                      *, apply_relu, hidden, ncls):
    k = pl.program_id(1)

    @pl.when(k == 0)
    def _():
        acc_adj[...] = jnp.zeros_like(acc_adj)
        acc_lab[...] = jnp.zeros_like(acc_lab)

    # bf16 adjacency tiles x bf16 projected features, f32 accumulation (MXU).
    acc_adj[...] += jnp.dot(a_ref[...], xw_ref[...],
                            preferred_element_type=jnp.float32)
    acc_lab[...] += jnp.dot(aw_ref[...], yw_ref[...],
                            preferred_element_type=jnp.float32)

    @pl.when(k == pl.num_programs(1) - 1)
    def _():
        tm = acc_adj.shape[0]
        h_adj = acc_adj[...] + bc_ref[...]
        h_lab = acc_lab[...] + bl_ref[...]

        # --- Attention over the 2 views, fused into one (2*TM,H)@(H,Ah) matmul ---
        h_cat = jnp.concatenate([h_adj, h_lab], axis=0)           # (2*TM, H)
        p = jnp.tanh(jnp.dot(h_cat, w1_ref[...],
                             preferred_element_type=jnp.float32) + b1_ref[...])
        # width-1 projection as VPU multiply + lane reduction (MXU stays free)
        s = jnp.sum(p * w2_ref[...], axis=-1, keepdims=True)      # (2*TM, 1)
        s_adj, s_lab = s[:tm], s[tm:]

        m = jnp.maximum(s_adj, s_lab)
        ea = jnp.exp(s_adj - m)
        el = jnp.exp(s_lab - m)
        inv = pl.reciprocal(ea + el, approx=True)                 # EUP reciprocal
        x_new = (ea * inv) * h_adj + (el * inv) * h_lab           # (TM, H)

        if apply_relu:
            x_new = jnp.maximum(x_new, 0.0)
            # TODO(synk): F.dropout(training=True) not reproduced (eval => identity).

        # --- Packed lane-dense output slab via one 128-wide matmul ---
        #   wide = x_new @ [I | Wm | 0] + [0 | bm | 0]
        #   cols [0,H)      -> x_new
        #   cols [H,H+C)    -> sigmoid(x_new @ Wm + bm)
        #   cols [H+C,PACK) -> 0
        wide = jnp.dot(x_new, wwide_ref[...],
                       preferred_element_type=jnp.float32) + bwide_ref[...]
        sig = 0.5 * (jnp.tanh(0.5 * wide) + 1.0)                  # sigmoid via EUP tanh
        col = jax.lax.broadcasted_iota(jnp.int32, wide.shape, 1)
        out_ref[...] = jnp.where(col < hidden, wide,
                                 jnp.where(col < hidden + ncls, sig, 0.0))


def run_layer(a_bf16, aw_bf16, xw, yw, bc, bl, w1_t, b1, w2, w_wide, b_wide,
              apply_relu, tile, pack, hid, ncls):
    n_pad = a_bf16.shape[0]
    ah = w1_t.shape[1]
    grid = (n_pad // tile, n_pad // tile)

    kernel = functools.partial(lflf_layer_kernel, apply_relu=apply_relu,
                               hidden=hid, ncls=ncls)

    def full(shape):
        return pl.BlockSpec(shape, lambda i, k: (0, 0))

    out = pl.pallas_call(
        kernel,
        out_shape=jax.ShapeDtypeStruct((n_pad, pack), jnp.float32),
        grid_spec=pltpu.PrefetchScalarGridSpec(
            num_scalar_prefetch=0,
            grid=grid,
            in_specs=[
                pl.BlockSpec((tile, tile), lambda i, k: (i, k)),   # A_norm  (bf16)
                pl.BlockSpec((tile, tile), lambda i, k: (i, k)),   # A_wnorm (bf16)
                pl.BlockSpec((tile, hid), lambda i, k: (k, 0)),    # xw (bf16)
                pl.BlockSpec((tile, hid), lambda i, k: (k, 0)),    # yw (bf16)
                full((1, hid)),      # bc
                full((1, hid)),      # bl
                full((hid, ah)),     # w1 (pre-transposed)
                full((1, ah)),       # b1
                full((1, ah)),       # w2 row
                full((hid, pack)),   # packed [I | Wm | 0]
                full((1, pack)),     # packed [0 | bm | 0]
            ],
            out_specs=pl.BlockSpec((tile, pack), lambda i, k: (i, 0)),
            scratch_shapes=[pltpu.VMEM((tile, hid), jnp.float32),
                            pltpu.VMEM((tile, hid), jnp.float32)],
        ),
        compiler_params=pltpu.CompilerParams(
            dimension_semantics=("parallel", "arbitrary"),
            vmem_limit_bytes=48 * 1024 * 1024),
    )(a_bf16, aw_bf16, xw, yw, bc, bl, w1_t, b1, w2, w_wide, b_wide)

    x_new = out[:, :hid]
    y_new = out[:, hid:hid + ncls]
    return x_new, y_new


# ----------------------------------------------------------------------------
# Glue: GCN symmetric normalization (dense) — plain JAX preprocessing
# ----------------------------------------------------------------------------
def gcn_norm_dense(edge_index, num_nodes, edge_weight=None):
    """Dense D^{-1/2} (A + I) D^{-1/2}, A[dst, src] layout (PyG source->target flow)."""
    src, dst = edge_index[0], edge_index[1]
    ne = src.shape[0]
    if edge_weight is None:
        edge_weight = jnp.ones((ne,), jnp.float32)
    loop = jnp.arange(num_nodes, dtype=src.dtype)
    src = jnp.concatenate([src, loop])
    dst = jnp.concatenate([dst, loop])
    w = jnp.concatenate([edge_weight, jnp.ones((num_nodes,), jnp.float32)])
    deg = jnp.zeros((num_nodes,), jnp.float32).at[dst].add(w)
    dinv = jnp.where(deg > 0, 1.0 / jnp.sqrt(deg), 0.0)
    norm = dinv[src] * w * dinv[dst]
    a = jnp.zeros((num_nodes, num_nodes), jnp.float32).at[dst, src].add(norm)
    return a


def _pad2d(a, n_pad):
    n = a.shape[0]
    if n == n_pad:
        return a
    return jnp.pad(a, ((0, n_pad - n), (0, n_pad - n)))


def _pad_rows(a, n_pad):
    n = a.shape[0]
    if n == n_pad:
        return a
    return jnp.pad(a, ((0, n_pad - n), (0, 0)))


# ----------------------------------------------------------------------------
# Full module forward
# ----------------------------------------------------------------------------
def lflf_gcn_forward(x, y, edge_index, edge_weights_per_layer, params,
                     num_layers, tile=None):
    n = x.shape[0]
    hid = params["wm_t"].shape[0]
    ncls = params["wm_t"].shape[1]
    if tile is None:
        tile = _choose_tile(n)
    n_pad = _round_up(n, tile)
    pack = _round_up(hid + ncls, 128)   # lane-dense packed output width

    # Adjacencies built once (scatter-add has no clean Pallas equivalent),
    # padded to the tile grid and stored in bf16 for the mem-bound stream.
    a_bf16 = _pad2d(gcn_norm_dense(edge_index, n), n_pad).astype(jnp.bfloat16)
    aw_bf16 = [
        _pad2d(gcn_norm_dense(edge_index, n, edge_weights_per_layer[i]),
               n_pad).astype(jnp.bfloat16)
        for i in range(num_layers)
    ]

    # Packed mlp weight [I_H | Wm | 0] and bias [0 | bm | 0] built once on host.
    zpad = pack - hid - ncls
    w_wide = jnp.concatenate(
        [jnp.eye(hid, dtype=jnp.float32), params["wm_t"],
         jnp.zeros((hid, zpad), jnp.float32)], axis=1)
    b_wide = jnp.concatenate(
        [jnp.zeros((1, hid), jnp.float32), params["bm"],
         jnp.zeros((1, zpad), jnp.float32)], axis=1)

    x_pad = _pad_rows(x, n_pad)
    y_pad = _pad_rows(y, n_pad)

    for i in range(num_layers):
        xw, yw = project_features(x_pad, y_pad,
                                  params["convs"][i]["wc_t"], params["wl_t"], tile)
        apply_relu = (i != num_layers - 1)
        x_pad, y_pad = run_layer(
            a_bf16, aw_bf16[i], xw, yw,
            params["convs"][i]["bc"], params["bl"],
            params["w1_t"], params["b1"], params["w2"],
            w_wide, b_wide,
            apply_relu, tile, pack, hid, ncls)

    return x_pad[:n], y_pad[:n]


def init_params(key, in_channels, hidden_channels, class_channels, num_layers,
                att_hidden=16):
    keys = jax.random.split(key, num_layers + 8)
    k = iter(keys)

    def lin_w_t(kk, in_c, out_c):
        # Pre-transposed: stored (in_c, out_c) so the kernels do x @ W (no .T).
        return jax.random.normal(kk, (in_c, out_c), jnp.float32) * (1.0 / jnp.sqrt(in_c))

    convs = []
    for i in range(num_layers):
        cin = in_channels if i == 0 else hidden_channels
        convs.append({
            "wc_t": lin_w_t(next(k), cin, hidden_channels),
            "bc": jnp.zeros((1, hidden_channels), jnp.float32),
        })
    params = {
        "convs": convs,
        # label_conv: GCNConv(class_channels, hidden_channels) — shared across layers
        "wl_t": lin_w_t(next(k), class_channels, hidden_channels),
        "bl": jnp.zeros((1, hidden_channels), jnp.float32),
        # Attention(H): Linear(H, att_hidden) -> tanh -> Linear(att_hidden, 1, bias=False)
        "w1_t": lin_w_t(next(k), hidden_channels, att_hidden),
        "b1": jnp.zeros((1, att_hidden), jnp.float32),
        "w2": lin_w_t(next(k), att_hidden, 1).T,        # stored as (1, att_hidden)
        # mlp: Linear(hidden_channels, class_channels)
        "wm_t": lin_w_t(next(k), hidden_channels, class_channels),
        "bm": jnp.zeros((1, class_channels), jnp.float32),
    }
    return params


if __name__ == "__main__":
    # Small deterministic problem; TILE=128 so the demo exercises a (2,2) grid
    # (accumulator init / epilogue gating / padding). Production uses tile=512.
    N = 200
    IN_C = 16
    HID = 32
    CLS = 8
    NUM_LAYERS = 2
    NUM_EDGES = 600
    TILE = 128

    key = jax.random.PRNGKey(0)
    k_x, k_y, k_src, k_dst, k_w, k_p = jax.random.split(key, 6)

    x = jax.random.normal(k_x, (N, IN_C), jnp.float32)
    y = jax.nn.softmax(jax.random.normal(k_y, (N, CLS), jnp.float32), axis=-1)

    src = jax.random.randint(k_src, (NUM_EDGES,), 0, N, dtype=jnp.int32)
    dst = jax.random.randint(k_dst, (NUM_EDGES,), 0, N, dtype=jnp.int32)
    edge_index = jnp.stack([src, dst], axis=0)

    # one edge-weight vector per layer (as `edge_weights[i]` in the PyTorch forward)
    edge_weights = [
        jax.nn.sigmoid(jax.random.normal(jax.random.fold_in(k_w, i),
                                         (NUM_EDGES,), jnp.float32))
        for i in range(NUM_LAYERS)
    ]

    params = init_params(k_p, IN_C, HID, CLS, NUM_LAYERS)

    x_out, y_out = lflf_gcn_forward(x, y, edge_index, edge_weights, params,
                                    NUM_LAYERS, tile=TILE)
    jax.block_until_ready((x_out, y_out))

    assert x_out.shape == (N, HID)
    assert y_out.shape == (N, CLS)
    assert bool(jnp.all(jnp.isfinite(x_out))) and bool(jnp.all(jnp.isfinite(y_out)))
    assert bool(jnp.all(y_out >= -1e-5)) and bool(jnp.all(y_out <= 1.0 + 1e-5))
    print("KERNEL_OK")
</pallas_src>

<mosaic_0001>
module attributes {stable_mosaic.version = 11 : i64} {
  func.func @proj_kernel(%arg0: i32, %arg1: memref<128x16xf32, #tpu.memory_space<vmem>>, %arg2: memref<128x8xf32, #tpu.memory_space<vmem>>, %arg3: memref<16x32xf32, #tpu.memory_space<vmem>>, %arg4: memref<8x32xf32, #tpu.memory_space<vmem>>, %arg5: memref<128x32xbf16, #tpu.memory_space<vmem>>, %arg6: memref<128x32xbf16, #tpu.memory_space<vmem>>) attributes {dimension_semantics = [#tpu.dimension_semantics<parallel>], iteration_bounds = array<i64: 2>, scalar_prefetch = 0 : i64, scratch_operands = 0 : i64, tpu.core_type = #tpu.core_type<tc>, window_params = [{transform_indices = @transform_0, window_bounds = array<i64: 128, 16>}, {transform_indices = @transform_1, window_bounds = array<i64: 128, 8>}, {pipeline_mode = #tpu.pipeline_mode<synchronous>, transform_indices = @transform_2, window_bounds = array<i64: 16, 32>}, {pipeline_mode = #tpu.pipeline_mode<synchronous>, transform_indices = @transform_3, window_bounds = array<i64: 8, 32>}, {transform_indices = @transform_4, window_bounds = array<i64: 128, 32>}, {transform_indices = @transform_5, window_bounds = array<i64: 128, 32>}]} {
    %c0 = arith.constant 0 : index
    %c0_0 = arith.constant 0 : index
    %0 = vector.load %arg1[%c0, %c0_0] : memref<128x16xf32, #tpu.memory_space<vmem>>, vector<128x16xf32>
    %c0_1 = arith.constant 0 : index
    %c0_2 = arith.constant 0 : index
    %1 = vector.load %arg3[%c0_1, %c0_2] : memref<16x32xf32, #tpu.memory_space<vmem>>, vector<16x32xf32>
    %cst = arith.constant dense<0.000000e+00> : vector<128x32xf32>
    %2 = tpu.matmul %0, %1, %cst {dimension_numbers = #tpu.dot_dimension_numbers<[1], [0], [0], [1], [0, 0, 1, 1], [], []>} : vector<128x16xf32>, vector<16x32xf32>, vector<128x32xf32> -> vector<128x32xf32>
    %3 = arith.truncf %2 : vector<128x32xf32> to vector<128x32xbf16>
    %c0_3 = arith.constant 0 : index
    %c0_4 = arith.constant 0 : index
    %4 = vector.load %arg5[%c0_3, %c0_4] : memref<128x32xbf16, #tpu.memory_space<vmem>>, vector<128x32xbf16>
    tpu.vector_store %arg5[%c0_3, %c0_4], %3 {strides = array<i32>} : memref<128x32xbf16, #tpu.memory_space<vmem>>, vector<128x32xbf16>,
    %c0_5 = arith.constant 0 : index
    %c0_6 = arith.constant 0 : index
    %5 = vector.load %arg2[%c0_5, %c0_6] : memref<128x8xf32, #tpu.memory_space<vmem>>, vector<128x8xf32>
    %c0_7 = arith.constant 0 : index
    %c0_8 = arith.constant 0 : index
    %6 = vector.load %arg4[%c0_7, %c0_8] : memref<8x32xf32, #tpu.memory_space<vmem>>, vector<8x32xf32>
    %cst_9 = arith.constant dense<0.000000e+00> : vector<128x32xf32>
    %7 = tpu.matmul %5, %6, %cst_9 {dimension_numbers = #tpu.dot_dimension_numbers<[1], [0], [0], [1], [0, 0, 1, 1], [], []>} : vector<128x8xf32>, vector<8x32xf32>, vector<128x32xf32> -> vector<128x32xf32>
    %8 = arith.truncf %7 : vector<128x32xf32> to vector<128x32xbf16>
    %c0_10 = arith.constant 0 : index
    %c0_11 = arith.constant 0 : index
    %9 = vector.load %arg6[%c0_10, %c0_11] : memref<128x32xbf16, #tpu.memory_space<vmem>>, vector<128x32xbf16>
    tpu.vector_store %arg6[%c0_10, %c0_11], %8 {strides = array<i32>} : memref<128x32xbf16, #tpu.memory_space<vmem>>, vector<128x32xbf16>,
    return
  }
  func.func @transform_0(%arg0: i32) -> (i32, i32) {
    %c0_i32 = arith.constant 0 : i32
    %c0_i32_0 = arith.constant 0 : i32
    return %arg0, %c0_i32 : i32, i32
  }
  func.func @transform_1(%arg0: i32) -> (i32, i32) {
    %c0_i32 = arith.constant 0 : i32
    %c0_i32_0 = arith.constant 0 : i32
    return %arg0, %c0_i32 : i32, i32
  }
  func.func @transform_2(%arg0: i32) -> (i32, i32) {
    %c0_i32 = arith.constant 0 : i32
    %c0_i32_0 = arith.constant 0 : i32
    %c0_i32_1 = arith.constant 0 : i32
    return %c0_i32, %c0_i32_0 : i32, i32
  }
  func.func @transform_3(%arg0: i32) -> (i32, i32) {
    %c0_i32 = arith.constant 0 : i32
    %c0_i32_0 = arith.constant 0 : i32
    %c0_i32_1 = arith.constant 0 : i32
    return %c0_i32, %c0_i32_0 : i32, i32
  }
  func.func @transform_4(%arg0: i32) -> (i32, i32) {
    %c0_i32 = arith.constant 0 : i32
    %c0_i32_0 = arith.constant 0 : i32
    return %arg0, %c0_i32 : i32, i32
  }
  func.func @transform_5(%arg0: i32) -> (i32, i32) {
    %c0_i32 = arith.constant 0 : i32
    %c0_i32_0 = arith.constant 0 : i32
    return %arg0, %c0_i32 : i32, i32
  }
}

</mosaic_0001>

<llo_original>
// kernel: tpu_custom_call.1
$region0: #{tpu_custom_call.1}
  #allocation0 [shape = 'u32[]', space=smem, size = 0x4, offset = 0x4, fixed_abs, tag = 'smem constant byte address 0x4 - core index']
  #allocation1 [shape = 'u32[144,128]{1,0:T(1,128)}', space=vmem, size = 0x12000, scoped, tag = 'internal scratch']
  %s0 = inlined_call_operand.vmem [shape: f32[256,16], index: 0, kind: input, shape index: {}]
  %s1 = inlined_call_operand.vmem [shape: f32[256,8], index: 1, kind: input, shape index: {}]
  %s2 = inlined_call_operand.vmem [shape: f32[16,32], index: 2, kind: input, shape index: {}]
  %s3 = inlined_call_operand.vmem [shape: f32[8,32], index: 3, kind: input, shape index: {}]
  %s4 = inlined_call_operand.vmem [shape: bf16[256,32], index: 4, kind: output, shape index: {0}]
  %s5 = inlined_call_operand.vmem [shape: bf16[256,32], index: 5, kind: output, shape index: {1}]
  %6 = xla_tuple %s4, %s5
  %s7 = sld [smem:[#allocation0]]
  $region57: #{tpu_custom_call.1} parent=0
    _
  %s9 = ssub.s32 1, %s7
  %s10 = scalar_select 0, %s9, %s7
  loop: start=0, step=1, limit=4
  $region2: #{tpu_custom_call.1} parent=0 // loop_pre_header
    _
  $region3: #{tpu_custom_call.1} parent=0 // loop_header
    %s12 = sphi 0, %s16
    %p13 = scmp.ge.s32.totalorder %s12, 4
    %s22 = sphi 0, %s24
    %s25 = sphi 0, %s22
    %s26 = sphi 0, %s25
    %s42 = sphi 0, %s26
    %s48 = sphi 0, %s50
    %s51 = sphi 0, %s48
    %s52 = sphi 0, %s51
    %s68 = sphi 0, %s52
    %s72 = sphi 0, %s72
    %s74 = sphi 0, %s72
    %s75 = sphi 0, %s74
    %s89 = sphi 0, %s75
    %s93 = sphi 0, %s93
    %s95 = sphi 0, %s93
    %s96 = sphi 0, %s95
    %s110 = sphi 0, %s96
    %s116 = sphi 0, %s118
    %s119 = sphi 0, %s116
    %s120 = sphi 0, %s119
    %s136 = sphi 0, %s120
    %s142 = sphi 0, %s144
    %s145 = sphi 0, %s142
    %s146 = sphi 0, %s145
    %s162 = sphi 0, %s146
  $region4: #{tpu_custom_call.1} parent=0 // loop_header_branch
    %15 = sbr.rel (%p13) target = $region8
  $region5: #{tpu_custom_call.1} parent=0 // loop_body
    %s17 = ssub.s32 %s12, 1
    %s18 = ssub.s32 %s12, 2
    %s19 = sadd.s32 %s12, 1
    %s20 = ssub.s32 %s12, %s19
    %p21 = scmp.eq.s32.totalorder %s20, 0
    %s23 = sadd.s32 %s22, 1
    %s24 = scalar_select %p21, %s22, %s23
    %p27 = pneg %p21
    %p28 = scmp.eq.s32.totalorder %s12, 1
    %p29 = por %p27, %p28
    %p30 = scmp.ne.s32.totalorder %s22, %s25
    %p31 = scmp.eq.s32.totalorder %s12, 0
    %p32 = por %p30, %p31
    %p33 = scmp.ne.s32.totalorder %s22, %s25
    %p34 = scmp.eq.s32.totalorder %s17, 1
    %p35 = por %p33, %p34
    %p36 = scmp.ne.s32.totalorder %s25, %s26
    %p37 = scmp.eq.s32.totalorder %s17, 0
    %p38 = por %p36, %p37
    %p39 = scmp.ne.s32.totalorder %s25, %s26
    %p40 = scmp.eq.s32.totalorder %s18, 1
    %p41 = por %p39, %p40
    %p43 = scmp.ne.s32.totalorder %s26, %s42
    %p44 = scmp.eq.s32.totalorder %s18, 0
    %p45 = por %p43, %p44
    %s46 = ssub.s32 %s12, %s19
    %p47 = scmp.eq.s32.totalorder %s46, 0
    %s49 = sadd.s32 %s48, 1
    %s50 = scalar_select %p47, %s48, %s49
    %p53 = pneg %p47
    %p54 = scmp.eq.s32.totalorder %s12, 1
    %p55 = por %p53, %p54
    %p56 = scmp.ne.s32.totalorder %s48, %s51
    %p57 = scmp.eq.s32.totalorder %s12, 0
    %p58 = por %p56, %p57
    %p59 = scmp.ne.s32.totalorder %s48, %s51
    %p60 = scmp.eq.s32.totalorder %s17, 1
    %p61 = por %p59, %p60
    %p62 = scmp.ne.s32.totalorder %s51, %s52
    %p63 = scmp.eq.s32.totalorder %s17, 0
    %p64 = por %p62, %p63
    %p65 = scmp.ne.s32.totalorder %s51, %s52
    %p66 = scmp.eq.s32.totalorder %s18, 1
    %p67 = por %p65, %p66
    %p69 = scmp.ne.s32.totalorder %s52, %s68
    %p70 = scmp.eq.s32.totalorder %s18, 0
    %p71 = por %p69, %p70
    %s73 = sadd.s32 %s72, 1
    %p76 = scmp.eq.s32.totalorder %s12, 1
    %p77 = scmp.ne.s32.totalorder %s72, %s74
    %p78 = scmp.eq.s32.totalorder %s12, 0
    %p79 = por %p77, %p78
    %p80 = scmp.ne.s32.totalorder %s72, %s74
    %p81 = scmp.eq.s32.totalorder %s17, 1
    %p82 = por %p80, %p81
    %p83 = scmp.ne.s32.totalorder %s74, %s75
    %p84 = scmp.eq.s32.totalorder %s17, 0
    %p85 = por %p83, %p84
    %p86 = scmp.ne.s32.totalorder %s74, %s75
    %p87 = scmp.eq.s32.totalorder %s18, 1
    %p88 = por %p86, %p87
    %p90 = scmp.ne.s32.totalorder %s75, %s89
    %p91 = scmp.eq.s32.totalorder %s18, 0
    %p92 = por %p90, %p91
    %s94 = sadd.s32 %s93, 1
    %p97 = scmp.eq.s32.totalorder %s12, 1
    %p98 = scmp.ne.s32.totalorder %s93, %s95
    %p99 = scmp.eq.s32.totalorder %s12, 0
    %p100 = por %p98, %p99
    %p101 = scmp.ne.s32.totalorder %s93, %s95
    %p102 = scmp.eq.s32.totalorder %s17, 1
    %p103 = por %p101, %p102
    %p104 = scmp.ne.s32.totalorder %s95, %s96
    %p105 = scmp.eq.s32.totalorder %s17, 0
    %p106 = por %p104, %p105
    %p107 = scmp.ne.s32.totalorder %s95, %s96
    %p108 = scmp.eq.s32.totalorder %s18, 1
    %p109 = por %p107, %p108
    %p111 = scmp.ne.s32.totalorder %s96, %s110
    %p112 = scmp.eq.s32.totalorder %s18, 0
    %p113 = por %p111, %p112
    %s114 = ssub.s32 %s12, %s19
    %p115 = scmp.eq.s32.totalorder %s114, 0
    %s117 = sadd.s32 %s116, 1
    %s118 = scalar_select %p115, %s116, %s117
    %p121 = pneg %p115
    %p122 = scmp.eq.s32.totalorder %s12, 1
    %p123 = por %p121, %p122
    %p124 = scmp.ne.s32.totalorder %s116, %s119
    %p125 = scmp.eq.s32.totalorder %s12, 0
    %p126 = por %p124, %p125
    %p127 = scmp.ne.s32.totalorder %s116, %s119
    %p128 = scmp.eq.s32.totalorder %s17, 1
    %p129 = por %p127, %p128
    %p130 = scmp.ne.s32.totalorder %s119, %s120
    %p131 = scmp.eq.s32.totalorder %s17, 0
    %p132 = por %p130, %p131
    %p133 = scmp.ne.s32.totalorder %s119, %s120
    %p134 = scmp.eq.s32.totalorder %s18, 1
    %p135 = por %p133, %p134
    %p137 = scmp.ne.s32.totalorder %s120, %s136
    %p138 = scmp.eq.s32.totalorder %s18, 0
    %p139 = por %p137, %p138
    %s140 = ssub.s32 %s12, %s19
    %p141 = scmp.eq.s32.totalorder %s140, 0
    %s143 = sadd.s32 %s142, 1
    %s144 = scalar_select %p141, %s142, %s143
    %p147 = pneg %p141
    %p148 = scmp.eq.s32.totalorder %s12, 1
    %p149 = por %p147, %p148
    %p150 = scmp.ne.s32.totalorder %s142, %s145
    %p151 = scmp.eq.s32.totalorder %s12, 0
    %p152 = por %p150, %p151
    %p153 = scmp.ne.s32.totalorder %s142, %s145
    %p154 = scmp.eq.s32.totalorder %s17, 1
    %p155 = por %p153, %p154
    %p156 = scmp.ne.s32.totalorder %s145, %s146
    %p157 = scmp.eq.s32.totalorder %s17, 0
    %p158 = por %p156, %p157
    %p159 = scmp.ne.s32.totalorder %s145, %s146
    %p160 = scmp.eq.s32.totalorder %s18, 1
    %p161 = por %p159, %p160
    %p163 = scmp.ne.s32.totalorder %s146, %s162
    %p164 = scmp.eq.s32.totalorder %s18, 0
    %p165 = por %p163, %p164
    %p166 = scmp.le.s32.totalorder 1, %s12
    %p167 = scmp.lt.s32.totalorder %s12, 3
    %p168 = pnand %p166, %p167
    %p169 = pneg %p168
    // Predicated region
    $region9: #{tpu_custom_call.1} parent=5 // pred_check
      _
    $region10: #{tpu_custom_call.1} parent=5 // pred_check_branch
      %171 = sbr.rel (%p168) target = $region12
    $region11: #{tpu_custom_call.1} parent=5 // pred_region
      %s172 = ssub.s32 %s12, 1
      // Predicated region
      $region13: #{tpu_custom_call.1} parent=11 // pred_check
        %p173 = pneg %p85
      $region14: #{tpu_custom_call.1} parent=11 // pred_check_branch
        %175 = sbr.rel (%p173) target = $region16
      $region15: #{tpu_custom_call.1} parent=11 // pred_region
        _
      $region16: #{tpu_custom_call.1} parent=11 // pred_fallthru
        _
      // Predicated region
      $region17: #{tpu_custom_call.1} parent=11 // pred_check
        %p176 = pneg %p106
      $region18: #{tpu_custom_call.1} parent=11 // pred_check_branch
        %178 = sbr.rel (%p176) target = $region20
      $region19: #{tpu_custom_call.1} parent=11 // pred_region
        _
      $region20: #{tpu_custom_call.1} parent=11 // pred_fallthru
        _
    $region12: #{tpu_custom_call.1} parent=5 // pred_fallthru
      _
    %p179 = scmp.lt.s32.totalorder %s12, 2
    // Predicated region
    $region21: #{tpu_custom_call.1} parent=5 // pred_check
      %p180 = pneg %p179
    $region22: #{tpu_custom_call.1} parent=5 // pred_check_branch
      %182 = sbr.rel (%p180) target = $region24
    $region23: #{tpu_custom_call.1} parent=5 // pred_region
      // Predicated region
      $region25: #{tpu_custom_call.1} parent=23 // pred_check
        %p183 = pneg %p32
      $region26: #{tpu_custom_call.1} parent=23 // pred_check_branch
        %185 = sbr.rel (%p183) target = $region28
      $region27: #{tpu_custom_call.1} parent=23 // pred_region
        %s186 = smul.u32 16, %s12
        %p187 = scmp.lt.s32.totalorder %s186, 31
        %s188 = scalar_select %p187, %s186, 31
        %s189 = smul.addr %s188, 8
        %s190 = scalar_lea.vmem %s0, %s189
        %s191 = smul.u32 16, %s12
      $region28: #{tpu_custom_call.1} parent=23 // pred_fallthru
        _
      // Predicated region
      $region29: #{tpu_custom_call.1} parent=23 // pred_check
        %p192 = pneg %p58
      $region30: #{tpu_custom_call.1} parent=23 // pred_check_branch
        %194 = sbr.rel (%p192) target = $region32
      $region31: #{tpu_custom_call.1} parent=23 // pred_region
        %s195 = smul.u32 16, %s12
        %p196 = scmp.lt.s32.totalorder %s195, 31
        %s197 = scalar_select %p196, %s195, 31
        %s198 = smul.addr %s197, 8
        %s199 = scalar_lea.vmem %s1, %s198
        %s200 = smul.u32 16, %s12
      $region32: #{tpu_custom_call.1} parent=23 // pred_fallthru
        _
    $region24: #{tpu_custom_call.1} parent=5 // pred_fallthru
      _
    %p201 = scmp.le.s32.totalorder 1, %s12
    %p202 = scmp.lt.s32.totalorder %s12, 3
    %p203 = pnand %p201, %p202
    %p204 = pneg %p203
    // Predicated region
    $region33: #{tpu_custom_call.1} parent=5 // pred_check
      _
    $region34: #{tpu_custom_call.1} parent=5 // pred_check_branch
      %206 = sbr.rel (%p203) target = $region36
    $region35: #{tpu_custom_call.1} parent=5 // pred_region
      %s207 = ssub.s32 %s12, 1
      %s208 = smul.u32 16, %s17
      %p209 = scmp.lt.s32.totalorder %s208, 31
      %s210 = scalar_select %p209, %s208, 31
      %s211 = smul.addr %s210, 8
      %s212 = scalar_lea.vmem %s0, %s211
      %p213 = pneg %p38
      %p214 = pneg %p35
      %s215 = smul.u32 16, %s17
      %p216 = scmp.lt.s32.totalorder %s215, 31
      %s217 = scalar_select %p216, %s215, 31
      %s218 = smul.addr %s217, 8
      %s219 = scalar_lea.vmem %s1, %s218
      %p220 = pneg %p64
      %p221 = pneg %p61
      %p222 = pneg %p85
      %p223 = pneg %p82
      %p224 = pneg %p106
      %p225 = pneg %p103
      %p226 = pneg %p132
      %p227 = pneg %p129
      %s228 = smul.u32 16, %s17
      %p229 = scmp.lt.s32.totalorder %s228, 31
      %s230 = scalar_select %p229, %s228, 31
      %s231 = smul.addr %s230, 4
      %s232 = scalar_lea.vmem %s4, %s231
      %p233 = pneg %p158
      %p234 = pneg %p155
      %s235 = smul.u32 16, %s17
      %p236 = scmp.lt.s32.totalorder %s235, 31
      %s237 = scalar_select %p236, %s235, 31
      %s238 = smul.addr %s237, 4
      %s239 = scalar_lea.vmem %s5, %s238
      %s240 = smul.u32 16, %s17
      %p241 = scmp.lt.s32.totalorder %s240, 31
      %s242 = scalar_select %p241, %s240, 31
      %s243 = smul.addr %s242, 8
      %s244 = scalar_lea.vmem %s0, %s243
      %s245 = smul.u32 16, %s17
      %s246 = smul.u32 16, %s17
      %p247 = scmp.lt.s32.totalorder %s246, 31
      %s248 = scalar_select %p247, %s246, 31
      %s249 = smul.addr %s248, 8
      %s250 = scalar_lea.vmem %s1, %s249
      %s251 = smul.u32 16, %s17
      %s252 = smul.u32 16, %s17
      %p253 = scmp.lt.s32.totalorder %s252, 31
      %s254 = scalar_select %p253, %s252, 31
      %s255 = smul.addr %s254, 4
      %s256 = scalar_lea.vmem %s4, %s255
      %s257 = smul.u32 16, %s17
      %s258 = smul.u32 16, %s17
      %p259 = scmp.lt.s32.totalorder %s258, 31
      %s260 = scalar_select %p259, %s258, 31
      %s261 = smul.addr %s260, 4
      %s262 = scalar_lea.vmem %s5, %s261
      %s263 = smul.u32 16, %s17
      %v264 = vld [vmem:[%s244] sm:$0xff]
      %v265 = vld [vmem:[%s244 + $0x8] sm:$0xff]
      %v266 = vld [vmem:[%s244 + $0x10] sm:$0xff]
      %v267 = vld [vmem:[%s244 + $0x18] sm:$0xff]
      %v268 = vld [vmem:[%s244 + $0x20] sm:$0xff]
      %v269 = vld [vmem:[%s244 + $0x28] sm:$0xff]
      %v270 = vld [vmem:[%s244 + $0x30] sm:$0xff]
      %v271 = vld [vmem:[%s244 + $0x38] sm:$0xff]
      %v272 = vld [vmem:[%s244 + $0x40] sm:$0xff]
      %v273 = vld [vmem:[%s244 + $0x48] sm:$0xff]
      %v274 = vld [vmem:[%s244 + $0x50] sm:$0xff]
      %v275 = vld [vmem:[%s244 + $0x58] sm:$0xff]
      %v276 = vld [vmem:[%s244 + $0x60] sm:$0xff]
      %v277 = vld [vmem:[%s244 + $0x68] sm:$0xff]
      %v278 = vld [vmem:[%s244 + $0x70] sm:$0xff]
      %v279 = vld [vmem:[%s244 + $0x78] sm:$0xff]
      %v280 = vld [vmem:[%s2] sm:$0xff]
      %v281 = vld [vmem:[%s2 + $0x8] sm:$0xff]
      %vm282 = vcmask 130048
      %v284 = vsel %vm282, %v264, 0
      %v287 = vsel %vm282, %v265, 0
      %v290 = vsel %vm282, %v266, 0
      %v293 = vsel %vm282, %v267, 0
      %v296 = vsel %vm282, %v268, 0
      %v299 = vsel %vm282, %v269, 0
      %v302 = vsel %vm282, %v270, 0
      %v305 = vsel %vm282, %v271, 0
      %v308 = vsel %vm282, %v272, 0
      %v311 = vsel %vm282, %v273, 0
      %v314 = vsel %vm282, %v274, 0
      %v317 = vsel %vm282, %v275, 0
      %v320 = vsel %vm282, %v276, 0
      %v323 = vsel %vm282, %v277, 0
      %v326 = vsel %vm282, %v278, 0
      %v329 = vsel %vm282, %v279, 0
      %331 = vmatprep.subr.mxu0 0.0
      %332 = vmatpush1.msra.mxu0 0.0
      %333 = vmatprep.subr.mxu0 0.0
      %334 = vmatpush1.msra.mxu0 0.0
      %335 = vmatprep.subr.mxu0 0.0
      %336 = vmatpush1.msra.mxu0 0.0
      %337 = vmatprep.subr.mxu0 0.0
      %338 = vmatpush1.msra.mxu0 0.0
      %339 = vmatprep.subr.mxu0 0.0
      %340 = vmatpush1.msra.mxu0 0.0
      %341 = vmatprep.subr.mxu0 0.0
      %342 = vmatpush1.msra.mxu0 0.0
      %343 = vmatprep.subr.mxu0 0.0
      %344 = vmatpush1.msra.mxu0 0.0
      %345 = vmatprep.subr.mxu0 0.0
      %346 = vmatpush1.msra.mxu0 0.0
      %347 = vmatprep.subr.mxu0 0.0
      %348 = vmatpush1.msra.mxu0 0.0
      %349 = vmatprep.subr.mxu0 0.0
      %350 = vmatpush1.msra.mxu0 0.0
      %351 = vmatprep.subr.mxu0 0.0
      %352 = vmatpush1.msra.mxu0 0.0
      %353 = vmatprep.subr.mxu0 0.0
      %354 = vmatpush1.msra.mxu0 0.0
      %355 = vmatprep.subr.mxu0 0.0
      %356 = vmatpush1.msra.mxu0 0.0
      %357 = vmatprep.subr.mxu0 0.0
      %358 = vmatpush1.msra.mxu0 0.0
      %359 = vmatprep.subr.mxu0 0.0
      %360 = vmatpush1.msra.mxu0 %v281
      %361 = vmatprep.subr.mxu0 0.0
      %362 = vmatpush1.msra.mxu0 %v280
      %363 = vmatprep.subr.mxu0 0.0
      %364 = vmatpush2.msra.mxu0 0.0
      %365 = vmatprep.subr.mxu0 0.0
      %366 = vmatpush2.msra.mxu0 0.0
      %367 = vmatprep.subr.mxu0 0.0
      %368 = vmatpush2.msra.mxu0 0.0
      %369 = vmatprep.subr.mxu0 0.0
      %370 = vmatpush2.msra.mxu0 0.0
      %371 = vmatprep.subr.mxu0 0.0
      %372 = vmatpush2.msra.mxu0 0.0
      %373 = vmatprep.subr.mxu0 0.0
      %374 = vmatpush2.msra.mxu0 0.0
      %375 = vmatprep.subr.mxu0 0.0
      %376 = vmatpush2.msra.mxu0 0.0
      %377 = vmatprep.subr.mxu0 0.0
      %378 = vmatpush2.msra.mxu0 0.0
      %379 = vmatprep.subr.mxu0 0.0
      %380 = vmatpush2.msra.mxu0 0.0
      %381 = vmatprep.subr.mxu0 0.0
      %382 = vmatpush2.msra.mxu0 0.0
      %383 = vmatprep.subr.mxu0 0.0
      %384 = vmatpush2.msra.mxu0 0.0
      %385 = vmatprep.subr.mxu0 0.0
      %386 = vmatpush2.msra.mxu0 0.0
      %387 = vmatprep.subr.mxu0 0.0
      %388 = vmatpush2.msra.mxu0 0.0
      %389 = vmatprep.subr.mxu0 0.0
      %390 = vmatpush2.msra.mxu0 0.0
      %391 = vmatprep.subr.mxu0 0.0
      %392 = vmatpush2.msra.mxu0 0.0
      %393 = vmatprep.subr.mxu0 0.0
      %394 = vmatpush2.msra.mxu0 0.0
      %395 = vmatprep.mubr.f32.mxu0 0.0
      %396 = vmatmul.mubr.f32.gmra.mxu0 %v284
      %v397 = vpop.f32.mrf.mxu0
      %v398 = vadd.f32 0.0, %v397
      %v399 = vpop.f32.mrf.mxu0
      %400 = vmatprep.mubr.f32.mxu0 0.0
      %401 = vmatmul.mubr.f32.gmra.mxu0 %v287
      %v402 = vpop.f32.mrf.mxu0
      %v403 = vadd.f32 0.0, %v402
      %v404 = vpop.f32.mrf.mxu0
      %405 = vmatprep.mubr.f32.mxu0 0.0
      %406 = vmatmul.mubr.f32.gmra.mxu0 %v290
      %v407 = vpop.f32.mrf.mxu0
      %v408 = vadd.f32 0.0, %v407
      %v409 = vpop.f32.mrf.mxu0
      %410 = vmatprep.mubr.f32.mxu0 0.0
      %411 = vmatmul.mubr.f32.gmra.mxu0 %v293
      %v412 = vpop.f32.mrf.mxu0
      %v413 = vadd.f32 0.0, %v412
      %v414 = vpop.f32.mrf.mxu0
      %415 = vmatprep.mubr.f32.mxu0 0.0
      %416 = vmatmul.mubr.f32.gmra.mxu0 %v296
      %v417 = vpop.f32.mrf.mxu0
      %v418 = vadd.f32 0.0, %v417
      %v419 = vpop.f32.mrf.mxu0
      %420 = vmatprep.mubr.f32.mxu0 0.0
      %421 = vmatmul.mubr.f32.gmra.mxu0 %v299
      %v422 = vpop.f32.mrf.mxu0
      %v423 = vadd.f32 0.0, %v422
      %v424 = vpop.f32.mrf.mxu0
      %425 = vmatprep.mubr.f32.mxu0 0.0
      %426 = vmatmul.mubr.f32.gmra.mxu0 %v302
      %v427 = vpop.f32.mrf.mxu0
      %v428 = vadd.f32 0.0, %v427
      %v429 = vpop.f32.mrf.mxu0
      %430 = vmatprep.mubr.f32.mxu0 0.0
      %431 = vmatmul.mubr.f32.gmra.mxu0 %v305
      %v432 = vpop.f32.mrf.mxu0
      %v433 = vadd.f32 0.0, %v432
      %v434 = vpop.f32.mrf.mxu0
      %435 = vmatprep.mubr.f32.mxu0 0.0
      %436 = vmatmul.mubr.f32.gmra.mxu0 %v308
      %v437 = vpop.f32.mrf.mxu0
      %v438 = vadd.f32 0.0, %v437
      %v439 = vpop.f32.mrf.mxu0
      %440 = vmatprep.mubr.f32.mxu0 0.0
      %441 = vmatmul.mubr.f32.gmra.mxu0 %v311
      %v442 = vpop.f32.mrf.mxu0
      %v443 = vadd.f32 0.0, %v442
      %v444 = vpop.f32.mrf.mxu0
      %445 = vmatprep.mubr.f32.mxu0 0.0
      %446 = vmatmul.mubr.f32.gmra.mxu0 %v314
      %v447 = vpop.f32.mrf.mxu0
      %v448 = vadd.f32 0.0, %v447
      %v449 = vpop.f32.mrf.mxu0
      %450 = vmatprep.mubr.f32.mxu0 0.0
      %451 = vmatmul.mubr.f32.gmra.mxu0 %v317
      %v452 = vpop.f32.mrf.mxu0
      %v453 = vadd.f32 0.0, %v452
      %v454 = vpop.f32.mrf.mxu0
      %455 = vmatprep.mubr.f32.mxu0 0.0
      %456 = vmatmul.mubr.f32.gmra.mxu0 %v320
      %v457 = vpop.f32.mrf.mxu0
      %v458 = vadd.f32 0.0, %v457
      %v459 = vpop.f32.mrf.mxu0
      %460 = vmatprep.mubr.f32.mxu0 0.0
      %461 = vmatmul.mubr.f32.gmra.mxu0 %v323
      %v462 = vpop.f32.mrf.mxu0
      %v463 = vadd.f32 0.0, %v462
      %v464 = vpop.f32.mrf.mxu0
      %465 = vmatprep.mubr.f32.mxu0 0.0
      %466 = vmatmul.mubr.f32.gmra.mxu0 %v326
      %v467 = vpop.f32.mrf.mxu0
      %v468 = vadd.f32 0.0, %v467
      %v469 = vpop.f32.mrf.mxu0
      %470 = vmatprep.mubr.f32.mxu0 0.0
      %471 = vmatmul.mubr.f32.gmra.mxu0 %v329
      %v472 = vpop.f32.mrf.mxu0
      %v473 = vadd.f32 0.0, %v472
      %v474 = vpop.f32.mrf.mxu0
      %475 = vdwg.mxu0
      %v476 = vpack.c.bf16 %v403, %v398
      %v477 = vpack.c.bf16 %v413, %v408
      %v478 = vpack.c.bf16 %v423, %v418
      %v479 = vpack.c.bf16 %v433, %v428
      %v480 = vpack.c.bf16 %v443, %v438
      %v481 = vpack.c.bf16 %v453, %v448
      %v482 = vpack.c.bf16 %v463, %v458
      %v483 = vpack.c.bf16 %v473, %v468
      %v492 = vunpack.c.l.b16 %v476
      %v493 = vunpack.c.h.b16 %v476
      %v494 = vunpack.c.l.b16 %v477
      %v495 = vunpack.c.h.b16 %v477
      %v496 = vunpack.c.l.b16 %v478
      %v497 = vunpack.c.h.b16 %v478
      %v498 = vunpack.c.l.b16 %v479
      %v499 = vunpack.c.h.b16 %v479
      %v500 = vunpack.c.l.b16 %v480
      %v501 = vunpack.c.h.b16 %v480
      %v502 = vunpack.c.l.b16 %v481
      %v503 = vunpack.c.h.b16 %v481
      %v504 = vunpack.c.l.b16 %v482
      %v505 = vunpack.c.h.b16 %v482
      %v506 = vunpack.c.l.b16 %v483
      %v507 = vunpack.c.h.b16 %v483
      %v508 = vpack.c.b16 %v492, %v492
      %v509 = vpack.c.b16 %v493, %v493
      %v510 = vpack.c.b16 %v494, %v494
      %v511 = vpack.c.b16 %v495, %v495
      %v512 = vpack.c.b16 %v496, %v496
      %v513 = vpack.c.b16 %v497, %v497
      %v514 = vpack.c.b16 %v498, %v498
      %v515 = vpack.c.b16 %v499, %v499
      %v516 = vpack.c.b16 %v500, %v500
      %v517 = vpack.c.b16 %v501, %v501
      %v518 = vpack.c.b16 %v502, %v502
      %v519 = vpack.c.b16 %v503, %v503
      %v520 = vpack.c.b16 %v504, %v504
      %v521 = vpack.c.b16 %v505, %v505
      %v522 = vpack.c.b16 %v506, %v506
      %v523 = vpack.c.b16 %v507, %v507
      %vm540 = vcmask 257024
      %541 = vst.msk [vmem:[%s256] sm:$0xf] %vm540, %v508
      %542 = vst.msk [vmem:[%s256 + $0x4] sm:$0xf] %vm540, %v509
      %543 = vst.msk [vmem:[%s256 + $0x8] sm:$0xf] %vm540, %v510
      %544 = vst.msk [vmem:[%s256 + $0xc] sm:$0xf] %vm540, %v511
      %545 = vst.msk [vmem:[%s256 + $0x10] sm:$0xf] %vm540, %v512
      %546 = vst.msk [vmem:[%s256 + $0x14] sm:$0xf] %vm540, %v513
      %547 = vst.msk [vmem:[%s256 + $0x18] sm:$0xf] %vm540, %v514
      %548 = vst.msk [vmem:[%s256 + $0x1c] sm:$0xf] %vm540, %v515
      %549 = vst.msk [vmem:[%s256 + $0x20] sm:$0xf] %vm540, %v516
      %550 = vst.msk [vmem:[%s256 + $0x24] sm:$0xf] %vm540, %v517
      %551 = vst.msk [vmem:[%s256 + $0x28] sm:$0xf] %vm540, %v518
      %552 = vst.msk [vmem:[%s256 + $0x2c] sm:$0xf] %vm540, %v519
      %553 = vst.msk [vmem:[%s256 + $0x30] sm:$0xf] %vm540, %v520
      %554 = vst.msk [vmem:[%s256 + $0x34] sm:$0xf] %vm540, %v521
      %555 = vst.msk [vmem:[%s256 + $0x38] sm:$0xf] %vm540, %v522
      %556 = vst.msk [vmem:[%s256 + $0x3c] sm:$0xf] %vm540, %v523
      %v557 = vld [vmem:[%s250] sm:$0xff]
      %v558 = vld [vmem:[%s250 + $0x8] sm:$0xff]
      %v559 = vld [vmem:[%s250 + $0x10] sm:$0xff]
      %v560 = vld [vmem:[%s250 + $0x18] sm:$0xff]
      %v561 = vld [vmem:[%s250 + $0x20] sm:$0xff]
      %v562 = vld [vmem:[%s250 + $0x28] sm:$0xff]
      %v563 = vld [vmem:[%s250 + $0x30] sm:$0xff]
      %v564 = vld [vmem:[%s250 + $0x38] sm:$0xff]
      %v565 = vld [vmem:[%s250 + $0x40] sm:$0xff]
      %v566 = vld [vmem:[%s250 + $0x48] sm:$0xff]
      %v567 = vld [vmem:[%s250 + $0x50] sm:$0xff]
      %v568 = vld [vmem:[%s250 + $0x58] sm:$0xff]
      %v569 = vld [vmem:[%s250 + $0x60] sm:$0xff]
      %v570 = vld [vmem:[%s250 + $0x68] sm:$0xff]
      %v571 = vld [vmem:[%s250 + $0x70] sm:$0xff]
      %v572 = vld [vmem:[%s250 + $0x78] sm:$0xff]
      %v573 = vld [vmem:[%s3] sm:$0xff]
      %vm574 = vcmask 64512
      %v576 = vsel %vm574, %v557, 0
      %v579 = vsel %vm574, %v558, 0
      %v582 = vsel %vm574, %v559, 0
      %v585 = vsel %vm574, %v560, 0
      %v588 = vsel %vm574, %v561, 0
      %v591 = vsel %vm574, %v562, 0
      %v594 = vsel %vm574, %v563, 0
      %v597 = vsel %vm574, %v564, 0
      %v600 = vsel %vm574, %v565, 0
      %v603 = vsel %vm574, %v566, 0
      %v606 = vsel %vm574, %v567, 0
      %v609 = vsel %vm574, %v568, 0
      %v612 = vsel %vm574, %v569, 0
      %v615 = vsel %vm574, %v570, 0
      %v618 = vsel %vm574, %v571, 0
      %v621 = vsel %vm574, %v572, 0
      %623 = vmatprep.subr.mxu0 0.0
      %624 = vmatpush1.msra.mxu0 0.0
      %625 = vmatprep.subr.mxu0 0.0
      %626 = vmatpush1.msra.mxu0 0.0
      %627 = vmatprep.subr.mxu0 0.0
      %628 = vmatpush1.msra.mxu0 0.0
      %629 = vmatprep.subr.mxu0 0.0
      %630 = vmatpush1.msra.mxu0 0.0
      %631 = vmatprep.subr.mxu0 0.0
      %632 = vmatpush1.msra.mxu0 0.0
      %633 = vmatprep.subr.mxu0 0.0
      %634 = vmatpush1.msra.mxu0 0.0
      %635 = vmatprep.subr.mxu0 0.0
      %636 = vmatpush1.msra.mxu0 0.0
      %637 = vmatprep.subr.mxu0 0.0
      %638 = vmatpush1.msra.mxu0 0.0
      %639 = vmatprep.subr.mxu0 0.0
      %640 = vmatpush1.msra.mxu0 0.0
      %641 = vmatprep.subr.mxu0 0.0
      %642 = vmatpush1.msra.mxu0 0.0
      %643 = vmatprep.subr.mxu0 0.0
      %644 = vmatpush1.msra.mxu0 0.0
      %645 = vmatprep.subr.mxu0 0.0
      %646 = vmatpush1.msra.mxu0 0.0
      %647 = vmatprep.subr.mxu0 0.0
      %648 = vmatpush1.msra.mxu0 0.0
      %649 = vmatprep.subr.mxu0 0.0
      %650 = vmatpush1.msra.mxu0 0.0
      %651 = vmatprep.subr.mxu0 0.0
      %652 = vmatpush1.msra.mxu0 0.0
      %653 = vmatprep.subr.mxu0 0.0
      %654 = vmatpush1.msra.mxu0 %v573
      %655 = vmatprep.subr.mxu0 0.0
      %656 = vmatpush2.msra.mxu0 0.0
      %657 = vmatprep.subr.mxu0 0.0
      %658 = vmatpush2.msra.mxu0 0.0
      %659 = vmatprep.subr.mxu0 0.0
      %660 = vmatpush2.msra.mxu0 0.0
      %661 = vmatprep.subr.mxu0 0.0
      %662 = vmatpush2.msra.mxu0 0.0
      %663 = vmatprep.subr.mxu0 0.0
      %664 = vmatpush2.msra.mxu0 0.0
      %665 = vmatprep.subr.mxu0 0.0
      %666 = vmatpush2.msra.mxu0 0.0
      %667 = vmatprep.subr.mxu0 0.0
      %668 = vmatpush2.msra.mxu0 0.0
      %669 = vmatprep.subr.mxu0 0.0
      %670 = vmatpush2.msra.mxu0 0.0
      %671 = vmatprep.subr.mxu0 0.0
      %672 = vmatpush2.msra.mxu0 0.0
      %673 = vmatprep.subr.mxu0 0.0
      %674 = vmatpush2.msra.mxu0 0.0
      %675 = vmatprep.subr.mxu0 0.0
      %676 = vmatpush2.msra.mxu0 0.0
      %677 = vmatprep.subr.mxu0 0.0
      %678 = vmatpush2.msra.mxu0 0.0
      %679 = vmatprep.subr.mxu0 0.0
      %680 = vmatpush2.msra.mxu0 0.0
      %681 = vmatprep.subr.mxu0 0.0
      %682 = vmatpush2.msra.mxu0 0.0
      %683 = vmatprep.subr.mxu0 0.0
      %684 = vmatpush2.msra.mxu0 0.0
      %685 = vmatprep.subr.mxu0 0.0
      %686 = vmatpush2.msra.mxu0 0.0
      %687 = vmatprep.mubr.f32.mxu0 0.0
      %688 = vmatmul.mubr.f32.gmra.mxu0 %v576
      %v689 = vpop.f32.mrf.mxu0
      %v690 = vadd.f32 0.0, %v689
      %v691 = vpop.f32.mrf.mxu0
      %692 = vmatprep.mubr.f32.mxu0 0.0
      %693 = vmatmul.mubr.f32.gmra.mxu0 %v579
      %v694 = vpop.f32.mrf.mxu0
      %v695 = vadd.f32 0.0, %v694
      %v696 = vpop.f32.mrf.mxu0
      %697 = vmatprep.mubr.f32.mxu0 0.0
      %698 = vmatmul.mubr.f32.gmra.mxu0 %v582
      %v699 = vpop.f32.mrf.mxu0
      %v700 = vadd.f32 0.0, %v699
      %v701 = vpop.f32.mrf.mxu0
      %702 = vmatprep.mubr.f32.mxu0 0.0
      %703 = vmatmul.mubr.f32.gmra.mxu0 %v585
      %v704 = vpop.f32.mrf.mxu0
      %v705 = vadd.f32 0.0, %v704
      %v706 = vpop.f32.mrf.mxu0
      %707 = vmatprep.mubr.f32.mxu0 0.0
      %708 = vmatmul.mubr.f32.gmra.mxu0 %v588
      %v709 = vpop.f32.mrf.mxu0
      %v710 = vadd.f32 0.0, %v709
      %v711 = vpop.f32.mrf.mxu0
      %712 = vmatprep.mubr.f32.mxu0 0.0
      %713 = vmatmul.mubr.f32.gmra.mxu0 %v591
      %v714 = vpop.f32.mrf.mxu0
      %v715 = vadd.f32 0.0, %v714
      %v716 = vpop.f32.mrf.mxu0
      %717 = vmatprep.mubr.f32.mxu0 0.0
      %718 = vmatmul.mubr.f32.gmra.mxu0 %v594
      %v719 = vpop.f32.mrf.mxu0
      %v720 = vadd.f32 0.0, %v719
      %v721 = vpop.f32.mrf.mxu0
      %722 = vmatprep.mubr.f32.mxu0 0.0
      %723 = vmatmul.mubr.f32.gmra.mxu0 %v597
      %v724 = vpop.f32.mrf.mxu0
      %v725 = vadd.f32 0.0, %v724
      %v726 = vpop.f32.mrf.mxu0
      %727 = vmatprep.mubr.f32.mxu0 0.0
      %728 = vmatmul.mubr.f32.gmra.mxu0 %v600
      %v729 = vpop.f32.mrf.mxu0
      %v730 = vadd.f32 0.0, %v729
      %v731 = vpop.f32.mrf.mxu0
      %732 = vmatprep.mubr.f32.mxu0 0.0
      %733 = vmatmul.mubr.f32.gmra.mxu0 %v603
      %v734 = vpop.f32.mrf.mxu0
      %v735 = vadd.f32 0.0, %v734
      %v736 = vpop.f32.mrf.mxu0
      %737 = vmatprep.mubr.f32.mxu0 0.0
      %738 = vmatmul.mubr.f32.gmra.mxu0 %v606
      %v739 = vpop.f32.mrf.mxu0
      %v740 = vadd.f32 0.0, %v739
      %v741 = vpop.f32.mrf.mxu0
      %742 = vmatprep.mubr.f32.mxu0 0.0
      %743 = vmatmul.mubr.f32.gmra.mxu0 %v609
      %v744 = vpop.f32.mrf.mxu0
      %v745 = vadd.f32 0.0, %v744
      %v746 = vpop.f32.mrf.mxu0
      %747 = vmatprep.mubr.f32.mxu0 0.0
      %748 = vmatmul.mubr.f32.gmra.mxu0 %v612
      %v749 = vpop.f32.mrf.mxu0
      %v750 = vadd.f32 0.0, %v749
      %v751 = vpop.f32.mrf.mxu0
      %752 = vmatprep.mubr.f32.mxu0 0.0
      %753 = vmatmul.mubr.f32.gmra.mxu0 %v615
      %v754 = vpop.f32.mrf.mxu0
      %v755 = vadd.f32 0.0, %v754
      %v756 = vpop.f32.mrf.mxu0
      %757 = vmatprep.mubr.f32.mxu0 0.0
      %758 = vmatmul.mubr.f32.gmra.mxu0 %v618
      %v759 = vpop.f32.mrf.mxu0
      %v760 = vadd.f32 0.0, %v759
      %v761 = vpop.f32.mrf.mxu0
      %762 = vmatprep.mubr.f32.mxu0 0.0
      %763 = vmatmul.mubr.f32.gmra.mxu0 %v621
      %v764 = vpop.f32.mrf.mxu0
      %v765 = vadd.f32 0.0, %v764
      %v766 = vpop.f32.mrf.mxu0
      %767 = vdwg.mxu0
      %v768 = vpack.c.bf16 %v695, %v690
      %v769 = vpack.c.bf16 %v705, %v700
      %v770 = vpack.c.bf16 %v715, %v710
      %v771 = vpack.c.bf16 %v725, %v720
      %v772 = vpack.c.bf16 %v735, %v730
      %v773 = vpack.c.bf16 %v745, %v740
      %v774 = vpack.c.bf16 %v755, %v750
      %v775 = vpack.c.bf16 %v765, %v760
      %v784 = vunpack.c.l.b16 %v768
      %v785 = vunpack.c.h.b16 %v768
      %v786 = vunpack.c.l.b16 %v769
      %v787 = vunpack.c.h.b16 %v769
      %v788 = vunpack.c.l.b16 %v770
      %v789 = vunpack.c.h.b16 %v770
      %v790 = vunpack.c.l.b16 %v771
      %v791 = vunpack.c.h.b16 %v771
      %v792 = vunpack.c.l.b16 %v772
      %v793 = vunpack.c.h.b16 %v772
      %v794 = vunpack.c.l.b16 %v773
      %v795 = vunpack.c.h.b16 %v773
      %v796 = vunpack.c.l.b16 %v774
      %v797 = vunpack.c.h.b16 %v774
      %v798 = vunpack.c.l.b16 %v775
      %v799 = vunpack.c.h.b16 %v775
      %v800 = vpack.c.b16 %v784, %v784
      %v801 = vpack.c.b16 %v785, %v785
      %v802 = vpack.c.b16 %v786, %v786
      %v803 = vpack.c.b16 %v787, %v787
      %v804 = vpack.c.b16 %v788, %v788
      %v805 = vpack.c.b16 %v789, %v789
      %v806 = vpack.c.b16 %v790, %v790
      %v807 = vpack.c.b16 %v791, %v791
      %v808 = vpack.c.b16 %v792, %v792
      %v809 = vpack.c.b16 %v793, %v793
      %v810 = vpack.c.b16 %v794, %v794
      %v811 = vpack.c.b16 %v795, %v795
      %v812 = vpack.c.b16 %v796, %v796
      %v813 = vpack.c.b16 %v797, %v797
      %v814 = vpack.c.b16 %v798, %v798
      %v815 = vpack.c.b16 %v799, %v799
      %832 = vst.msk [vmem:[%s262] sm:$0xf] %vm540, %v800
      %833 = vst.msk [vmem:[%s262 + $0x4] sm:$0xf] %vm540, %v801
      %834 = vst.msk [vmem:[%s262 + $0x8] sm:$0xf] %vm540, %v802
      %835 = vst.msk [vmem:[%s262 + $0xc] sm:$0xf] %vm540, %v803
      %836 = vst.msk [vmem:[%s262 + $0x10] sm:$0xf] %vm540, %v804
      %837 = vst.msk [vmem:[%s262 + $0x14] sm:$0xf] %vm540, %v805
      %838 = vst.msk [vmem:[%s262 + $0x18] sm:$0xf] %vm540, %v806
      %839 = vst.msk [vmem:[%s262 + $0x1c] sm:$0xf] %vm540, %v807
      %840 = vst.msk [vmem:[%s262 + $0x20] sm:$0xf] %vm540, %v808
      %841 = vst.msk [vmem:[%s262 + $0x24] sm:$0xf] %vm540, %v809
      %842 = vst.msk [vmem:[%s262 + $0x28] sm:$0xf] %vm540, %v810
      %843 = vst.msk [vmem:[%s262 + $0x2c] sm:$0xf] %vm540, %v811
      %844 = vst.msk [vmem:[%s262 + $0x30] sm:$0xf] %vm540, %v812
      %845 = vst.msk [vmem:[%s262 + $0x34] sm:$0xf] %vm540, %v813
      %846 = vst.msk [vmem:[%s262 + $0x38] sm:$0xf] %vm540, %v814
      %847 = vst.msk [vmem:[%s262 + $0x3c] sm:$0xf] %vm540, %v815
      %s848 = smul.u32 16, %s17
      %p849 = scmp.lt.s32.totalorder %s848, 31
      %s850 = scalar_select %p849, %s848, 31
      %s851 = smul.addr %s850, 4
      %s852 = scalar_lea.vmem %s4, %s851
      %s853 = smul.u32 16, %s17
      %p854 = scmp.lt.s32.totalorder %s853, 31
      %s855 = scalar_select %p854, %s853, 31
      %s856 = smul.addr %s855, 4
      %s857 = scalar_lea.vmem %s5, %s856
      // Predicated region
      $region37: #{tpu_custom_call.1} parent=35 // pred_check
        %p858 = pneg %p129
      $region38: #{tpu_custom_call.1} parent=35 // pred_check_branch
        %860 = sbr.rel (%p858) target = $region40
      $region39: #{tpu_custom_call.1} parent=35 // pred_region
        %s861 = smul.u32 16, %s17
      $region40: #{tpu_custom_call.1} parent=35 // pred_fallthru
        _
      // Predicated region
      $region41: #{tpu_custom_call.1} parent=35 // pred_check
        %p862 = pneg %p155
      $region42: #{tpu_custom_call.1} parent=35 // pred_check_branch
        %864 = sbr.rel (%p862) target = $region44
      $region43: #{tpu_custom_call.1} parent=35 // pred_region
        %s865 = smul.u32 16, %s17
      $region44: #{tpu_custom_call.1} parent=35 // pred_fallthru
        _
    $region36: #{tpu_custom_call.1} parent=5 // pred_fallthru
      _
    %p866 = scmp.le.s32.totalorder 2, %s12
    // Predicated region
    $region45: #{tpu_custom_call.1} parent=5 // pred_check
      %p867 = pneg %p866
    $region46: #{tpu_custom_call.1} parent=5 // pred_check_branch
      %869 = sbr.rel (%p867) target = $region48
    $region47: #{tpu_custom_call.1} parent=5 // pred_region
      %s870 = ssub.s32 %s12, 2
      // Predicated region
      $region49: #{tpu_custom_call.1} parent=47 // pred_check
        %p871 = pneg %p135
      $region50: #{tpu_custom_call.1} parent=47 // pred_check_branch
        %873 = sbr.rel (%p871) target = $region52
      $region51: #{tpu_custom_call.1} parent=47 // pred_region
        %s874 = smul.u32 16, %s18
        %p875 = scmp.lt.s32.totalorder %s874, 31
        %s876 = scalar_select %p875, %s874, 31
        %s877 = smul.addr %s876, 4
        %s878 = scalar_lea.vmem %s4, %s877
      $region52: #{tpu_custom_call.1} parent=47 // pred_fallthru
        _
      // Predicated region
      $region53: #{tpu_custom_call.1} parent=47 // pred_check
        %p879 = pneg %p161
      $region54: #{tpu_custom_call.1} parent=47 // pred_check_branch
        %881 = sbr.rel (%p879) target = $region56
      $region55: #{tpu_custom_call.1} parent=47 // pred_region
        %s882 = smul.u32 16, %s18
        %p883 = scmp.lt.s32.totalorder %s882, 31
        %s884 = scalar_select %p883, %s882, 31
        %s885 = smul.addr %s884, 4
        %s886 = scalar_lea.vmem %s5, %s885
      $region56: #{tpu_custom_call.1} parent=47 // pred_fallthru
        _
    $region48: #{tpu_custom_call.1} parent=5 // pred_fallthru
      _
  $region6: #{tpu_custom_call.1} parent=0 // loop_footer
    %s16 = sadd.s32 1, %s12
  $region7: #{tpu_custom_call.1} parent=0 // loop_footer_branch
    %11 = sbr.rel target = $region3
  $region8: #{tpu_custom_call.1} parent=0 // loop_exit
    _

</llo_original>
